<compile_context>
chip_gen: v7x
topology: tpu7x:2x2x1
jax: 0.10.0
libtpu: 0.0.40
codegen_flags: <defaults>
</compile_context>

<pallas_src>
from functools import partial

import jax
import jax.numpy as jnp
from jax.experimental import pallas as pl
from jax.experimental.pallas import tpu as pltpu


def _round_up(n, m):
    return ((n + m - 1) // m) * m


def _mlp_kernel(xy_ref, w1_ref, b1_ref, w2_ref, b2_ref,
                w3_ref, b3_ref, w4_ref, b4_ref, o_ref):
    xy = xy_ref[...]                                  # (8, TB) f32; rows 0/1 = x/y
    w1 = w1_ref[...]                                  # (64, 8)  (possibly bf16)
    w2 = w2_ref[...]                                  # (32, 64)
    w3 = w3_ref[...]                                  # (16, 32)

    # fc1 + relu on the MXU: (64,8) @ (8,TB) -> (64,TB); concat fused via padded rows.
    h1 = jnp.maximum(
        jnp.dot(w1, xy.astype(w1.dtype), preferred_element_type=jnp.float32)
        + b1_ref[...], 0.0)
    # fc2 + relu: (32,64) @ (64,TB) -> (32,TB)
    h2 = jnp.maximum(
        jnp.dot(w2, h1.astype(w2.dtype), preferred_element_type=jnp.float32)
        + b2_ref[...], 0.0)
    # fc3 + relu: (16,32) @ (32,TB) -> (16,TB)
    h3 = jnp.maximum(
        jnp.dot(w3, h2.astype(w3.dtype), preferred_element_type=jnp.float32)
        + b3_ref[...], 0.0)
    # fc4: 16 -> 1 as VPU multiply + sublane reduction -> lane-dense (1, TB) output.
    o_ref[...] = jnp.sum(h3 * w4_ref[...], axis=0, keepdims=True) + b4_ref[...]


@partial(jax.jit, static_argnames=("tb", "use_bf16"))
def nn_s_dro_forward(x, y, params, *, tb=8192, use_bf16=True):
    """x, y: arrays whose trailing dims flatten to 1 feature each. Returns (B, 1) f32."""
    w1, b1, w2, b2, w3, b3, w4, b4 = params           # PyTorch layout: W (out,in), b (out,)
    xf = x.reshape(x.shape[0], -1).astype(jnp.float32)    # (B, 1)
    yf = y.reshape(y.shape[0], -1).astype(jnp.float32)    # (B, 1)
    assert xf.shape[1] == 1 and yf.shape[1] == 1, "fc1_s expects 1+1 combined features"
    B = xf.shape[0]

    # ---- Batch tiling ------------------------------------------------------
    # Lane-aligned tile; cap defensively rounded to a multiple of 128.
    tb_cap = _round_up(max(int(tb), 128), 128)
    b128 = _round_up(B, 128)
    if b128 >= 2 * 128:
        # Keep >= 2 grid steps so the "parallel" axis can use both TCs on v7x.
        TB = min(tb_cap, _round_up(pl.cdiv(b128, 2), 128))
    else:
        TB = min(tb_cap, b128)
    B_pad = _round_up(B, TB)
    n_tiles = B_pad // TB

    # ---- Input prep (fused under jit) --------------------------------------
    # Single (8, B_pad) slab: row 0 = x, row 1 = y, rows 2..7 zero (sublane pad).
    xy = jnp.concatenate([xf.T, yf.T], axis=0)        # (2, B)
    xy = jnp.pad(xy, ((0, 6), (0, B_pad - B)))        # (8, B_pad)

    # Weights stay in PyTorch (out, in) layout; biases as (out, 1) columns (f32).
    mxu_dtype = jnp.bfloat16 if use_bf16 else jnp.float32
    w1p = jnp.pad(w1, ((0, 0), (0, 6))).astype(mxu_dtype)   # (64, 8) zero-padded K
    w2m = w2.astype(mxu_dtype)                              # (32, 64)
    w3m = w3.astype(mxu_dtype)                              # (16, 32)
    b1c = b1.reshape(-1, 1).astype(jnp.float32)             # (64, 1)
    b2c = b2.reshape(-1, 1).astype(jnp.float32)             # (32, 1)
    b3c = b3.reshape(-1, 1).astype(jnp.float32)             # (16, 1)
    w4c = w4.reshape(-1, 1).astype(jnp.float32)             # (16, 1)
    b4c = b4.reshape(1, 1).astype(jnp.float32)              # (1, 1)

    xy_spec = pl.BlockSpec((8, TB), lambda i: (0, i))
    out_spec = pl.BlockSpec((1, TB), lambda i: (0, i))
    const = lambda arr: pl.BlockSpec(arr.shape, lambda i: (0, 0))

    flops = int(2 * (64 * 8 + 32 * 64 + 16 * 32 + 16) * B_pad)
    bytes_accessed = int(4 * ((8 + 1) * B_pad
                              + 64 * 8 + 64 + 32 * 64 + 32 + 16 * 32 + 16 + 16 + 1))

    out = pl.pallas_call(
        _mlp_kernel,
        out_shape=jax.ShapeDtypeStruct((1, B_pad), jnp.float32),
        grid=(n_tiles,),
        in_specs=[
            xy_spec,
            const(w1p), const(b1c),
            const(w2m), const(b2c),
            const(w3m), const(b3c),
            const(w4c), const(b4c),
        ],
        out_specs=out_spec,
        compiler_params=pltpu.CompilerParams(
            dimension_semantics=("parallel",)),
        cost_estimate=pl.CostEstimate(
            flops=flops, transcendentals=0, bytes_accessed=bytes_accessed),
    )(xy, w1p, b1c, w2m, b2c, w3m, b3c, w4c, b4c)

    return out[0, :B].reshape(B, 1)


def init_params(key):
    """PyTorch-style init: W (out, in), b (out,), uniform(+-1/sqrt(fan_in))."""
    ks = jax.random.split(key, 8)

    def linear(kw, kb, fan_in, fan_out):
        bound = 1.0 / jnp.sqrt(jnp.float32(fan_in))
        w = jax.random.uniform(kw, (fan_out, fan_in), jnp.float32, -bound, bound)
        b = jax.random.uniform(kb, (fan_out,), jnp.float32, -bound, bound)
        return w, b

    w1, b1 = linear(ks[0], ks[1], 2, 64)
    w2, b2 = linear(ks[2], ks[3], 64, 32)
    w3, b3 = linear(ks[4], ks[5], 32, 16)
    w4, b4 = linear(ks[6], ks[7], 16, 1)
    return (w1, b1, w2, b2, w3, b3, w4, b4)


def reference(x, y, params):
    w1, b1, w2, b2, w3, b3, w4, b4 = params
    comb = jnp.concatenate(
        [x.reshape(x.shape[0], -1), y.reshape(y.shape[0], -1)], axis=1
    ).astype(jnp.float32)
    h1 = jnp.maximum(comb @ w1.T + b1, 0.0)
    h2 = jnp.maximum(h1 @ w2.T + b2, 0.0)
    h3 = jnp.maximum(h2 @ w3.T + b3, 0.0)
    return h3 @ w4.T + b4


if __name__ == "__main__":
    key = jax.random.PRNGKey(0)
    kx, ky, kp, kx2, ky2 = jax.random.split(key, 5)

    params = init_params(kp)

    # Small demo batch (x and y each flatten to 1 feature -> Linear(2, 64)), f32 MXU path.
    B = 8
    x = jax.random.normal(kx, (B, 1), jnp.float32)
    y = jax.random.normal(ky, (B, 1), jnp.float32)
    out = nn_s_dro_forward(x, y, params, use_bf16=False)
    jax.block_until_ready(out)
    ref = reference(x, y, params)
    assert out.shape == (B, 1)
    assert jnp.allclose(out, ref, atol=1e-4, rtol=1e-4)

    # Non-multiple-of-tile batch with a small tile to exercise the batch grid + tail padding.
    B2 = 300
    x2 = jax.random.normal(kx2, (B2, 1), jnp.float32)
    y2 = jax.random.normal(ky2, (B2, 1), jnp.float32)
    out2 = nn_s_dro_forward(x2, y2, params, tb=128, use_bf16=False)
    jax.block_until_ready(out2)
    ref2 = reference(x2, y2, params)
    assert out2.shape == (B2, 1)
    assert jnp.allclose(out2, ref2, atol=1e-4, rtol=1e-4)

    # Default config: large tile cap, >=2 tiles, bf16 MXU operands with f32 accumulation.
    out3 = nn_s_dro_forward(x2, y2, params)
    jax.block_until_ready(out3)
    assert out3.shape == (B2, 1)
    assert jnp.allclose(out3, ref2, atol=5e-2, rtol=5e-2)

    print("KERNEL_OK")
</pallas_src>

<mosaic_0001>
module attributes {stable_mosaic.version = 11 : i64} {
  func.func @_mlp_kernel(%arg0: i32, %arg1: memref<8x128xf32, #tpu.memory_space<vmem>>, %arg2: memref<64x8xf32, #tpu.memory_space<vmem>>, %arg3: memref<64x1xf32, #tpu.memory_space<vmem>>, %arg4: memref<32x64xf32, #tpu.memory_space<vmem>>, %arg5: memref<32x1xf32, #tpu.memory_space<vmem>>, %arg6: memref<16x32xf32, #tpu.memory_space<vmem>>, %arg7: memref<16x1xf32, #tpu.memory_space<vmem>>, %arg8: memref<16x1xf32, #tpu.memory_space<vmem>>, %arg9: memref<1x1xf32, #tpu.memory_space<vmem>>, %arg10: memref<1x128xf32, #tpu.memory_space<vmem>>) attributes {dimension_semantics = [#tpu.dimension_semantics<parallel>], iteration_bounds = array<i64: 1>, scalar_prefetch = 0 : i64, scratch_operands = 0 : i64, tpu.core_type = #tpu.core_type<tc>, window_params = [{transform_indices = @transform_0, window_bounds = array<i64: 8, 128>}, {pipeline_mode = #tpu.pipeline_mode<synchronous>, transform_indices = @transform_1, window_bounds = array<i64: 64, 8>}, {pipeline_mode = #tpu.pipeline_mode<synchronous>, transform_indices = @transform_2, window_bounds = array<i64: 64, 1>}, {pipeline_mode = #tpu.pipeline_mode<synchronous>, transform_indices = @transform_3, window_bounds = array<i64: 32, 64>}, {pipeline_mode = #tpu.pipeline_mode<synchronous>, transform_indices = @transform_4, window_bounds = array<i64: 32, 1>}, {pipeline_mode = #tpu.pipeline_mode<synchronous>, transform_indices = @transform_5, window_bounds = array<i64: 16, 32>}, {pipeline_mode = #tpu.pipeline_mode<synchronous>, transform_indices = @transform_6, window_bounds = array<i64: 16, 1>}, {pipeline_mode = #tpu.pipeline_mode<synchronous>, transform_indices = @transform_7, window_bounds = array<i64: 16, 1>}, {pipeline_mode = #tpu.pipeline_mode<synchronous>, transform_indices = @transform_8, window_bounds = array<i64: 1, 1>}, {transform_indices = @transform_9, window_bounds = array<i64: 1, 128>}]} {
    %c0 = arith.constant 0 : index
    %c0_0 = arith.constant 0 : index
    %0 = vector.load %arg1[%c0, %c0_0] : memref<8x128xf32, #tpu.memory_space<vmem>>, vector<8x128xf32>
    %c0_1 = arith.constant 0 : index
    %c0_2 = arith.constant 0 : index
    %1 = vector.load %arg2[%c0_1, %c0_2] : memref<64x8xf32, #tpu.memory_space<vmem>>, vector<64x8xf32>
    %c0_3 = arith.constant 0 : index
    %c0_4 = arith.constant 0 : index
    %2 = vector.load %arg4[%c0_3, %c0_4] : memref<32x64xf32, #tpu.memory_space<vmem>>, vector<32x64xf32>
    %c0_5 = arith.constant 0 : index
    %c0_6 = arith.constant 0 : index
    %3 = vector.load %arg6[%c0_5, %c0_6] : memref<16x32xf32, #tpu.memory_space<vmem>>, vector<16x32xf32>
    %cst = arith.constant dense<0.000000e+00> : vector<64x128xf32>
    %4 = tpu.matmul %1, %0, %cst {dimension_numbers = #tpu.dot_dimension_numbers<[1], [0], [0], [1], [0, 0, 1, 1], [], []>} : vector<64x8xf32>, vector<8x128xf32>, vector<64x128xf32> -> vector<64x128xf32>
    %c0_7 = arith.constant 0 : index
    %c0_8 = arith.constant 0 : index
    %5 = vector.load %arg3[%c0_7, %c0_8] : memref<64x1xf32, #tpu.memory_space<vmem>>, vector<64x1xf32>
    %6 = vector.broadcast %5 : vector<64x1xf32> to vector<64x128xf32>
    %7 = arith.addf %4, %6 : vector<64x128xf32>
    %cst_9 = arith.constant 0.000000e+00 : f32
    %8 = vector.broadcast %cst_9 : f32 to vector<64x128xf32>
    %9 = arith.maximumf %7, %8 : vector<64x128xf32>
    %cst_10 = arith.constant dense<0.000000e+00> : vector<32x128xf32>
    %10 = tpu.matmul %2, %9, %cst_10 {dimension_numbers = #tpu.dot_dimension_numbers<[1], [0], [0], [1], [0, 0, 1, 1], [], []>} : vector<32x64xf32>, vector<64x128xf32>, vector<32x128xf32> -> vector<32x128xf32>
    %c0_11 = arith.constant 0 : index
    %c0_12 = arith.constant 0 : index
    %11 = vector.load %arg5[%c0_11, %c0_12] : memref<32x1xf32, #tpu.memory_space<vmem>>, vector<32x1xf32>
    %12 = vector.broadcast %11 : vector<32x1xf32> to vector<32x128xf32>
    %13 = arith.addf %10, %12 : vector<32x128xf32>
    %cst_13 = arith.constant 0.000000e+00 : f32
    %14 = vector.broadcast %cst_13 : f32 to vector<32x128xf32>
    %15 = arith.maximumf %13, %14 : vector<32x128xf32>
    %cst_14 = arith.constant dense<0.000000e+00> : vector<16x128xf32>
    %16 = tpu.matmul %3, %15, %cst_14 {dimension_numbers = #tpu.dot_dimension_numbers<[1], [0], [0], [1], [0, 0, 1, 1], [], []>} : vector<16x32xf32>, vector<32x128xf32>, vector<16x128xf32> -> vector<16x128xf32>
    %c0_15 = arith.constant 0 : index
    %c0_16 = arith.constant 0 : index
    %17 = vector.load %arg7[%c0_15, %c0_16] : memref<16x1xf32, #tpu.memory_space<vmem>>, vector<16x1xf32>
    %18 = vector.broadcast %17 : vector<16x1xf32> to vector<16x128xf32>
    %19 = arith.addf %16, %18 : vector<16x128xf32>
    %cst_17 = arith.constant 0.000000e+00 : f32
    %20 = vector.broadcast %cst_17 : f32 to vector<16x128xf32>
    %21 = arith.maximumf %19, %20 : vector<16x128xf32>
    %c0_18 = arith.constant 0 : index
    %c0_19 = arith.constant 0 : index
    %22 = vector.load %arg8[%c0_18, %c0_19] : memref<16x1xf32, #tpu.memory_space<vmem>>, vector<16x1xf32>
    %23 = vector.broadcast %22 : vector<16x1xf32> to vector<16x128xf32>
    %24 = arith.mulf %21, %23 : vector<16x128xf32>
    %cst_20 = arith.constant dense<0.000000e+00> : vector<128xf32>
    %25 = vector.multi_reduction <add>, %24, %cst_20 [0] : vector<16x128xf32> to vector<128xf32>
    %26 = vector.shape_cast %25 : vector<128xf32> to vector<1x128xf32>
    %c0_21 = arith.constant 0 : index
    %c0_22 = arith.constant 0 : index
    %27 = vector.load %arg9[%c0_21, %c0_22] : memref<1x1xf32, #tpu.memory_space<vmem>>, vector<1x1xf32>
    %28 = vector.broadcast %27 : vector<1x1xf32> to vector<1x128xf32>
    %29 = arith.addf %26, %28 : vector<1x128xf32>
    %c0_23 = arith.constant 0 : index
    %c0_24 = arith.constant 0 : index
    %30 = vector.load %arg10[%c0_23, %c0_24] : memref<1x128xf32, #tpu.memory_space<vmem>>, vector<1x128xf32>
    tpu.vector_store %arg10[%c0_23, %c0_24], %29 {strides = array<i32>} : memref<1x128xf32, #tpu.memory_space<vmem>>, vector<1x128xf32>,
    return
  }
  func.func @transform_0(%arg0: i32) -> (i32, i32) {
    %c0_i32 = arith.constant 0 : i32
    %c0_i32_0 = arith.constant 0 : i32
    return %c0_i32, %arg0 : i32, i32
  }
  func.func @transform_1(%arg0: i32) -> (i32, i32) {
    %c0_i32 = arith.constant 0 : i32
    %c0_i32_0 = arith.constant 0 : i32
    %c0_i32_1 = arith.constant 0 : i32
    return %c0_i32, %c0_i32_0 : i32, i32
  }
  func.func @transform_2(%arg0: i32) -> (i32, i32) {
    %c0_i32 = arith.constant 0 : i32
    %c0_i32_0 = arith.constant 0 : i32
    %c0_i32_1 = arith.constant 0 : i32
    return %c0_i32, %c0_i32_0 : i32, i32
  }
  func.func @transform_3(%arg0: i32) -> (i32, i32) {
    %c0_i32 = arith.constant 0 : i32
    %c0_i32_0 = arith.constant 0 : i32
    %c0_i32_1 = arith.constant 0 : i32
    return %c0_i32, %c0_i32_0 : i32, i32
  }
  func.func @transform_4(%arg0: i32) -> (i32, i32) {
    %c0_i32 = arith.constant 0 : i32
    %c0_i32_0 = arith.constant 0 : i32
    %c0_i32_1 = arith.constant 0 : i32
    return %c0_i32, %c0_i32_0 : i32, i32
  }
  func.func @transform_5(%arg0: i32) -> (i32, i32) {
    %c0_i32 = arith.constant 0 : i32
    %c0_i32_0 = arith.constant 0 : i32
    %c0_i32_1 = arith.constant 0 : i32
    return %c0_i32, %c0_i32_0 : i32, i32
  }
  func.func @transform_6(%arg0: i32) -> (i32, i32) {
    %c0_i32 = arith.constant 0 : i32
    %c0_i32_0 = arith.constant 0 : i32
    %c0_i32_1 = arith.constant 0 : i32
    return %c0_i32, %c0_i32_0 : i32, i32
  }
  func.func @transform_7(%arg0: i32) -> (i32, i32) {
    %c0_i32 = arith.constant 0 : i32
    %c0_i32_0 = arith.constant 0 : i32
    %c0_i32_1 = arith.constant 0 : i32
    return %c0_i32, %c0_i32_0 : i32, i32
  }
  func.func @transform_8(%arg0: i32) -> (i32, i32) {
    %c0_i32 = arith.constant 0 : i32
    %c0_i32_0 = arith.constant 0 : i32
    %c0_i32_1 = arith.constant 0 : i32
    return %c0_i32, %c0_i32_0 : i32, i32
  }
  func.func @transform_9(%arg0: i32) -> (i32, i32) {
    %c0_i32 = arith.constant 0 : i32
    %c0_i32_0 = arith.constant 0 : i32
    return %c0_i32, %arg0 : i32, i32
  }
}

</mosaic_0001>

<llo_original>
// kernel: nn_s_dro_forward.1
$region0: #{nn_s_dro_forward.1}
  #allocation0 [shape = 'u32[]', space=smem, size = 0x4, offset = 0x4, fixed_abs, tag = 'smem constant byte address 0x4 - core index']
  #allocation1 [shape = 'u32[144,128]{1,0:T(1,128)}', space=vmem, size = 0x12000, scoped, tag = 'internal scratch']
  #allocation2 [shape = 'f32[1,1]{1,0:T(1,128)S(1)}', space=vmem, size = 0x200, scoped, tag = 'scoped memory for nn_s_dro_forward.1']
  %s0 = inlined_call_operand.vmem [shape: f32[8,128], index: 0, kind: input, shape index: {}]
  %s1 = inlined_call_operand.vmem [shape: f32[64,8], index: 1, kind: input, shape index: {}]
  %s2 = inlined_call_operand.vmem [shape: f32[64,1], index: 2, kind: input, shape index: {}]
  %s3 = inlined_call_operand.vmem [shape: f32[32,64], index: 3, kind: input, shape index: {}]
  %s4 = inlined_call_operand.vmem [shape: f32[32,1], index: 4, kind: input, shape index: {}]
  %s5 = inlined_call_operand.vmem [shape: f32[16,32], index: 5, kind: input, shape index: {}]
  %s6 = inlined_call_operand.vmem [shape: f32[16,1], index: 6, kind: input, shape index: {}]
  %s7 = inlined_call_operand.vmem [shape: f32[16,1], index: 7, kind: input, shape index: {}]
  %s8 = inlined_call_operand.<no memory space> [shape: f32[1,1], index: 8, kind: input, shape index: {}]
  %s9 = inlined_call_operand.vmem [shape: f32[1,128], index: 9, kind: output, shape index: {}]
  %s10 = sld [smem:[#allocation0]]
  $region46: #{nn_s_dro_forward.1} parent=0
    _
  %s12 = ssub.s32 1, %s10
  %s13 = scalar_select 0, %s12, %s10
  %v14 = vstv %s8
  %15 = vst [vmem:[#allocation2] sm:$0x1] %v14
  // Predicated region
  $region2: #{nn_s_dro_forward.1} parent=0 // pred_check
    _
  $region3: #{nn_s_dro_forward.1} parent=0 // pred_check_branch
    %17 = sbr.rel (0) target = $region5
  $region4: #{nn_s_dro_forward.1} parent=0 // pred_region
    _
  $region5: #{nn_s_dro_forward.1} parent=0 // pred_fallthru
    _
  // Predicated region
  $region6: #{nn_s_dro_forward.1} parent=0 // pred_check
    _
  $region7: #{nn_s_dro_forward.1} parent=0 // pred_check_branch
    %19 = sbr.rel (0) target = $region9
  $region8: #{nn_s_dro_forward.1} parent=0 // pred_region
    _
  $region9: #{nn_s_dro_forward.1} parent=0 // pred_fallthru
    _
  // Predicated region
  $region10: #{nn_s_dro_forward.1} parent=0 // pred_check
    _
  $region11: #{nn_s_dro_forward.1} parent=0 // pred_check_branch
    %21 = sbr.rel (0) target = $region13
  $region12: #{nn_s_dro_forward.1} parent=0 // pred_region
    _
  $region13: #{nn_s_dro_forward.1} parent=0 // pred_fallthru
    _
  // Predicated region
  $region14: #{nn_s_dro_forward.1} parent=0 // pred_check
    _
  $region15: #{nn_s_dro_forward.1} parent=0 // pred_check_branch
    %23 = sbr.rel (0) target = $region17
  $region16: #{nn_s_dro_forward.1} parent=0 // pred_region
    _
  $region17: #{nn_s_dro_forward.1} parent=0 // pred_fallthru
    _
  // Predicated region
  $region18: #{nn_s_dro_forward.1} parent=0 // pred_check
    _
  $region19: #{nn_s_dro_forward.1} parent=0 // pred_check_branch
    %25 = sbr.rel (0) target = $region21
  $region20: #{nn_s_dro_forward.1} parent=0 // pred_region
    _
  $region21: #{nn_s_dro_forward.1} parent=0 // pred_fallthru
    _
  // Predicated region
  $region22: #{nn_s_dro_forward.1} parent=0 // pred_check
    _
  $region23: #{nn_s_dro_forward.1} parent=0 // pred_check_branch
    %27 = sbr.rel (0) target = $region25
  $region24: #{nn_s_dro_forward.1} parent=0 // pred_region
    _
  $region25: #{nn_s_dro_forward.1} parent=0 // pred_fallthru
    _
  // Predicated region
  $region26: #{nn_s_dro_forward.1} parent=0 // pred_check
    _
  $region27: #{nn_s_dro_forward.1} parent=0 // pred_check_branch
    %29 = sbr.rel (0) target = $region29
  $region28: #{nn_s_dro_forward.1} parent=0 // pred_region
    _
  $region29: #{nn_s_dro_forward.1} parent=0 // pred_fallthru
    _
  // Predicated region
  $region30: #{nn_s_dro_forward.1} parent=0 // pred_check
    _
  $region31: #{nn_s_dro_forward.1} parent=0 // pred_check_branch
    %31 = sbr.rel (0) target = $region33
  $region32: #{nn_s_dro_forward.1} parent=0 // pred_region
    _
  $region33: #{nn_s_dro_forward.1} parent=0 // pred_fallthru
    _
  // Predicated region
  $region34: #{nn_s_dro_forward.1} parent=0 // pred_check
    _
  $region35: #{nn_s_dro_forward.1} parent=0 // pred_check_branch
    %33 = sbr.rel (0) target = $region37
  $region36: #{nn_s_dro_forward.1} parent=0 // pred_region
    _
  $region37: #{nn_s_dro_forward.1} parent=0 // pred_fallthru
    _
  %v34 = vld [vmem:[%s0] sm:$0xff]
  %v35 = vld [vmem:[%s1] sm:$0xff]
  %v36 = vld [vmem:[%s1 + $0x8] sm:$0xff]
  %v37 = vld [vmem:[%s1 + $0x10] sm:$0xff]
  %v38 = vld [vmem:[%s1 + $0x18] sm:$0xff]
  %v39 = vld [vmem:[%s1 + $0x20] sm:$0xff]
  %v40 = vld [vmem:[%s1 + $0x28] sm:$0xff]
  %v41 = vld [vmem:[%s1 + $0x30] sm:$0xff]
  %v42 = vld [vmem:[%s1 + $0x38] sm:$0xff]
  %v43 = vld [vmem:[%s3] sm:$0xff]
  %v44 = vld [vmem:[%s3 + $0x8] sm:$0xff]
  %v45 = vld [vmem:[%s3 + $0x10] sm:$0xff]
  %v46 = vld [vmem:[%s3 + $0x18] sm:$0xff]
  %v47 = vld [vmem:[%s5] sm:$0xff]
  %v48 = vld [vmem:[%s5 + $0x8] sm:$0xff]
  %v49 = vld [vmem:[%s2] sm:$0xff]
  %v50 = vld [vmem:[%s2 + $0x8] sm:$0xff]
  %v51 = vld [vmem:[%s2 + $0x10] sm:$0xff]
  %v52 = vld [vmem:[%s2 + $0x18] sm:$0xff]
  %v53 = vld [vmem:[%s2 + $0x20] sm:$0xff]
  %v54 = vld [vmem:[%s2 + $0x28] sm:$0xff]
  %v55 = vld [vmem:[%s2 + $0x30] sm:$0xff]
  %v56 = vld [vmem:[%s2 + $0x38] sm:$0xff]
  %58 = vset.pattern.permute.xlu0 0
  %59 = vperm.xlu0 %58, %v49
  %v60 = vpop.permute.xlu0 %59
  %63 = vset.pattern.permute.xlu0 0
  %64 = vperm.xlu0 %63, %v50
  %v65 = vpop.permute.xlu0 %64
  %68 = vset.pattern.permute.xlu0 0
  %69 = vperm.xlu0 %68, %v51
  %v70 = vpop.permute.xlu0 %69
  %73 = vset.pattern.permute.xlu0 0
  %74 = vperm.xlu0 %73, %v52
  %v75 = vpop.permute.xlu0 %74
  %78 = vset.pattern.permute.xlu0 0
  %79 = vperm.xlu0 %78, %v53
  %v80 = vpop.permute.xlu0 %79
  %83 = vset.pattern.permute.xlu0 0
  %84 = vperm.xlu0 %83, %v54
  %v85 = vpop.permute.xlu0 %84
  %88 = vset.pattern.permute.xlu0 0
  %89 = vperm.xlu0 %88, %v55
  %v90 = vpop.permute.xlu0 %89
  %93 = vset.pattern.permute.xlu0 0
  %94 = vperm.xlu0 %93, %v56
  %v95 = vpop.permute.xlu0 %94
  %vm97 = vcmask 64512
  %v99 = vsel %vm97, %v35, 0
  %v102 = vsel %vm97, %v36, 0
  %v105 = vsel %vm97, %v37, 0
  %v108 = vsel %vm97, %v38, 0
  %v111 = vsel %vm97, %v39, 0
  %v114 = vsel %vm97, %v40, 0
  %v117 = vsel %vm97, %v41, 0
  %v120 = vsel %vm97, %v42, 0
  %122 = vmatprep.subr.mxu0 0.0
  %123 = vmatpush1.msra.mxu0 %v34
  %124 = vmatprep.subr.mxu0 0.0
  %125 = vmatpush1.msra.mxu0 0.0
  %126 = vmatprep.subr.mxu0 0.0
  %127 = vmatpush1.msra.mxu0 0.0
  %128 = vmatprep.subr.mxu0 0.0
  %129 = vmatpush1.msra.mxu0 0.0
  %130 = vmatprep.subr.mxu0 0.0
  %131 = vmatpush1.msra.mxu0 0.0
  %132 = vmatprep.subr.mxu0 0.0
  %133 = vmatpush1.msra.mxu0 0.0
  %134 = vmatprep.subr.mxu0 0.0
  %135 = vmatpush1.msra.mxu0 0.0
  %136 = vmatprep.subr.mxu0 0.0
  %137 = vmatpush1.msra.mxu0 0.0
  %138 = vmatprep.subr.mxu0 0.0
  %139 = vmatpush1.msra.mxu0 0.0
  %140 = vmatprep.subr.mxu0 0.0
  %141 = vmatpush1.msra.mxu0 0.0
  %142 = vmatprep.subr.mxu0 0.0
  %143 = vmatpush1.msra.mxu0 0.0
  %144 = vmatprep.subr.mxu0 0.0
  %145 = vmatpush1.msra.mxu0 0.0
  %146 = vmatprep.subr.mxu0 0.0
  %147 = vmatpush1.msra.mxu0 0.0
  %148 = vmatprep.subr.mxu0 0.0
  %149 = vmatpush1.msra.mxu0 0.0
  %150 = vmatprep.subr.mxu0 0.0
  %151 = vmatpush1.msra.mxu0 0.0
  %152 = vmatprep.subr.mxu0 0.0
  %153 = vmatpush1.msra.mxu0 0.0
  %154 = vmatprep.subr.mxu0 0.0
  %155 = vmatpush1.msra.mxu0 0.0
  %156 = vmatprep.subr.mxu0 0.0
  %157 = vmatpush1.msra.mxu0 0.0
  %158 = vmatprep.subr.mxu0 0.0
  %159 = vmatpush1.msra.mxu0 0.0
  %160 = vmatprep.subr.mxu0 0.0
  %161 = vmatpush1.msra.mxu0 0.0
  %162 = vmatprep.subr.mxu0 0.0
  %163 = vmatpush1.msra.mxu0 0.0
  %164 = vmatprep.subr.mxu0 0.0
  %165 = vmatpush1.msra.mxu0 0.0
  %166 = vmatprep.subr.mxu0 0.0
  %167 = vmatpush1.msra.mxu0 0.0
  %168 = vmatprep.subr.mxu0 0.0
  %169 = vmatpush1.msra.mxu0 0.0
  %170 = vmatprep.subr.mxu0 0.0
  %171 = vmatpush1.msra.mxu0 0.0
  %172 = vmatprep.subr.mxu0 0.0
  %173 = vmatpush1.msra.mxu0 0.0
  %174 = vmatprep.subr.mxu0 0.0
  %175 = vmatpush1.msra.mxu0 0.0
  %176 = vmatprep.subr.mxu0 0.0
  %177 = vmatpush1.msra.mxu0 0.0
  %178 = vmatprep.subr.mxu0 0.0
  %179 = vmatpush1.msra.mxu0 0.0
  %180 = vmatprep.subr.mxu0 0.0
  %181 = vmatpush1.msra.mxu0 0.0
  %182 = vmatprep.subr.mxu0 0.0
  %183 = vmatpush1.msra.mxu0 0.0
  %184 = vmatprep.subr.mxu0 0.0
  %185 = vmatpush1.msra.mxu0 0.0
  %186 = vmatprep.mubr.f32.mxu0 0.0
  %187 = vmatmul.mubr.f32.gmra.mrb[0].mxu0 %v99
  %v188 = vpop.f32.mrb[0].mxu0
  %v189 = vadd.f32 %v60, %v188
  %v190 = vpop.f32.mrb[0].mxu0
  %191 = vmatprep.mubr.f32.mxu0 0.0
  %192 = vmatmul.mubr.f32.gmra.mrb[0].mxu0 %v102
  %v193 = vpop.f32.mrb[0].mxu0
  %v194 = vadd.f32 %v65, %v193
  %v195 = vpop.f32.mrb[0].mxu0
  %196 = vmatprep.mubr.f32.mxu0 0.0
  %197 = vmatmul.mubr.f32.gmra.mrb[0].mxu0 %v105
  %v198 = vpop.f32.mrb[0].mxu0
  %v199 = vadd.f32 %v70, %v198
  %v200 = vpop.f32.mrb[0].mxu0
  %201 = vmatprep.mubr.f32.mxu0 0.0
  %202 = vmatmul.mubr.f32.gmra.mrb[0].mxu0 %v108
  %v203 = vpop.f32.mrb[0].mxu0
  %v204 = vadd.f32 %v75, %v203
  %v205 = vpop.f32.mrb[0].mxu0
  %206 = vmatprep.mubr.f32.mxu0 0.0
  %207 = vmatmul.mubr.f32.gmra.mrb[0].mxu0 %v111
  %v208 = vpop.f32.mrb[0].mxu0
  %v209 = vadd.f32 %v80, %v208
  %v210 = vpop.f32.mrb[0].mxu0
  %211 = vmatprep.mubr.f32.mxu0 0.0
  %212 = vmatmul.mubr.f32.gmra.mrb[0].mxu0 %v114
  %v213 = vpop.f32.mrb[0].mxu0
  %v214 = vadd.f32 %v85, %v213
  %v215 = vpop.f32.mrb[0].mxu0
  %216 = vmatprep.mubr.f32.mxu0 0.0
  %217 = vmatmul.mubr.f32.gmra.mrb[0].mxu0 %v117
  %v218 = vpop.f32.mrb[0].mxu0
  %v219 = vadd.f32 %v90, %v218
  %v220 = vpop.f32.mrb[0].mxu0
  %221 = vmatprep.mubr.f32.mxu0 0.0
  %222 = vmatmul.mubr.f32.gmra.mrb[0].mxu0 %v120
  %v223 = vpop.f32.mrb[0].mxu0
  %v224 = vadd.f32 %v95, %v223
  %v225 = vpop.f32.mrb[0].mxu0
  %226 = vdwg.mxu0
  %v227 = vmax.f32 %v189, 0.0
  %v228 = vmax.f32 %v194, 0.0
  %v229 = vmax.f32 %v199, 0.0
  %v230 = vmax.f32 %v204, 0.0
  %v231 = vmax.f32 %v209, 0.0
  %v232 = vmax.f32 %v214, 0.0
  %v233 = vmax.f32 %v219, 0.0
  %v234 = vmax.f32 %v224, 0.0
  %v235 = vld [vmem:[%s4] sm:$0xff]
  %v236 = vld [vmem:[%s4 + $0x8] sm:$0xff]
  %v237 = vld [vmem:[%s4 + $0x10] sm:$0xff]
  %v238 = vld [vmem:[%s4 + $0x18] sm:$0xff]
  %240 = vset.pattern.permute.xlu0 0
  %241 = vperm.xlu0 %240, %v235
  %v242 = vpop.permute.xlu0 %241
  %245 = vset.pattern.permute.xlu0 0
  %246 = vperm.xlu0 %245, %v236
  %v247 = vpop.permute.xlu0 %246
  %250 = vset.pattern.permute.xlu0 0
  %251 = vperm.xlu0 %250, %v237
  %v252 = vpop.permute.xlu0 %251
  %255 = vset.pattern.permute.xlu0 0
  %256 = vperm.xlu0 %255, %v238
  %v257 = vpop.permute.xlu0 %256
  %vm259 = vcmask 523264
  %v261 = vsel %vm259, %v43, 0
  %v264 = vsel %vm259, %v44, 0
  %v267 = vsel %vm259, %v45, 0
  %v270 = vsel %vm259, %v46, 0
  %272 = vmatprep.subr.mxu0 0.0
  %273 = vmatpush1.msra.mxu0 %v227
  %274 = vmatprep.subr.mxu0 0.0
  %275 = vmatpush1.msra.mxu0 %v228
  %276 = vmatprep.subr.mxu0 0.0
  %277 = vmatpush1.msra.mxu0 %v229
  %278 = vmatprep.subr.mxu0 0.0
  %279 = vmatpush1.msra.mxu0 %v230
  %280 = vmatprep.subr.mxu0 0.0
  %281 = vmatpush1.msra.mxu0 %v231
  %282 = vmatprep.subr.mxu0 0.0
  %283 = vmatpush1.msra.mxu0 %v232
  %284 = vmatprep.subr.mxu0 0.0
  %285 = vmatpush1.msra.mxu0 %v233
  %286 = vmatprep.subr.mxu0 0.0
  %287 = vmatpush1.msra.mxu0 %v234
  %288 = vmatprep.subr.mxu0 0.0
  %289 = vmatpush1.msra.mxu0 0.0
  %290 = vmatprep.subr.mxu0 0.0
  %291 = vmatpush1.msra.mxu0 0.0
  %292 = vmatprep.subr.mxu0 0.0
  %293 = vmatpush1.msra.mxu0 0.0
  %294 = vmatprep.subr.mxu0 0.0
  %295 = vmatpush1.msra.mxu0 0.0
  %296 = vmatprep.subr.mxu0 0.0
  %297 = vmatpush1.msra.mxu0 0.0
  %298 = vmatprep.subr.mxu0 0.0
  %299 = vmatpush1.msra.mxu0 0.0
  %300 = vmatprep.subr.mxu0 0.0
  %301 = vmatpush1.msra.mxu0 0.0
  %302 = vmatprep.subr.mxu0 0.0
  %303 = vmatpush1.msra.mxu0 0.0
  %304 = vmatprep.subr.mxu0 0.0
  %305 = vmatpush1.msra.mxu0 0.0
  %306 = vmatprep.subr.mxu0 0.0
  %307 = vmatpush1.msra.mxu0 0.0
  %308 = vmatprep.subr.mxu0 0.0
  %309 = vmatpush1.msra.mxu0 0.0
  %310 = vmatprep.subr.mxu0 0.0
  %311 = vmatpush1.msra.mxu0 0.0
  %312 = vmatprep.subr.mxu0 0.0
  %313 = vmatpush1.msra.mxu0 0.0
  %314 = vmatprep.subr.mxu0 0.0
  %315 = vmatpush1.msra.mxu0 0.0
  %316 = vmatprep.subr.mxu0 0.0
  %317 = vmatpush1.msra.mxu0 0.0
  %318 = vmatprep.subr.mxu0 0.0
  %319 = vmatpush1.msra.mxu0 0.0
  %320 = vmatprep.subr.mxu0 0.0
  %321 = vmatpush1.msra.mxu0 0.0
  %322 = vmatprep.subr.mxu0 0.0
  %323 = vmatpush1.msra.mxu0 0.0
  %324 = vmatprep.subr.mxu0 0.0
  %325 = vmatpush1.msra.mxu0 0.0
  %326 = vmatprep.subr.mxu0 0.0
  %327 = vmatpush1.msra.mxu0 0.0
  %328 = vmatprep.subr.mxu0 0.0
  %329 = vmatpush1.msra.mxu0 0.0
  %330 = vmatprep.subr.mxu0 0.0
  %331 = vmatpush1.msra.mxu0 0.0
  %332 = vmatprep.subr.mxu0 0.0
  %333 = vmatpush1.msra.mxu0 0.0
  %334 = vmatprep.subr.mxu0 0.0
  %335 = vmatpush1.msra.mxu0 0.0
  %336 = vmatprep.mubr.f32.mxu0 0.0
  %337 = vmatmul.mubr.f32.gmra.mrb[0].mxu0 %v261
  %v338 = vpop.f32.mrb[0].mxu0
  %v339 = vadd.f32 %v242, %v338
  %v340 = vpop.f32.mrb[0].mxu0
  %341 = vmatprep.mubr.f32.mxu0 0.0
  %342 = vmatmul.mubr.f32.gmra.mrb[0].mxu0 %v264
  %v343 = vpop.f32.mrb[0].mxu0
  %v344 = vadd.f32 %v247, %v343
  %v345 = vpop.f32.mrb[0].mxu0
  %346 = vmatprep.mubr.f32.mxu0 0.0
  %347 = vmatmul.mubr.f32.gmra.mrb[0].mxu0 %v267
  %v348 = vpop.f32.mrb[0].mxu0
  %v349 = vadd.f32 %v252, %v348
  %v350 = vpop.f32.mrb[0].mxu0
  %351 = vmatprep.mubr.f32.mxu0 0.0
  %352 = vmatmul.mubr.f32.gmra.mrb[0].mxu0 %v270
  %v353 = vpop.f32.mrb[0].mxu0
  %v354 = vadd.f32 %v257, %v353
  %v355 = vpop.f32.mrb[0].mxu0
  %356 = vdwg.mxu0
  %v357 = vmax.f32 %v339, 0.0
  %v358 = vmax.f32 %v344, 0.0
  %v359 = vmax.f32 %v349, 0.0
  %v360 = vmax.f32 %v354, 0.0
  %v361 = vld [vmem:[%s6] sm:$0xff]
  %v362 = vld [vmem:[%s6 + $0x8] sm:$0xff]
  %364 = vset.pattern.permute.xlu0 0
  %365 = vperm.xlu0 %364, %v361
  %v366 = vpop.permute.xlu0 %365
  %369 = vset.pattern.permute.xlu0 0
  %370 = vperm.xlu0 %369, %v362
  %v371 = vpop.permute.xlu0 %370
  %vm373 = vcmask 261120
  %v375 = vsel %vm373, %v47, 0
  %v378 = vsel %vm373, %v48, 0
  %380 = vmatprep.subr.mxu0 0.0
  %381 = vmatpush1.msra.mxu0 %v357
  %382 = vmatprep.subr.mxu0 0.0
  %383 = vmatpush1.msra.mxu0 %v358
  %384 = vmatprep.subr.mxu0 0.0
  %385 = vmatpush1.msra.mxu0 %v359
  %386 = vmatprep.subr.mxu0 0.0
  %387 = vmatpush1.msra.mxu0 %v360
  %388 = vmatprep.subr.mxu0 0.0
  %389 = vmatpush1.msra.mxu0 0.0
  %390 = vmatprep.subr.mxu0 0.0
  %391 = vmatpush1.msra.mxu0 0.0
  %392 = vmatprep.subr.mxu0 0.0
  %393 = vmatpush1.msra.mxu0 0.0
  %394 = vmatprep.subr.mxu0 0.0
  %395 = vmatpush1.msra.mxu0 0.0
  %396 = vmatprep.subr.mxu0 0.0
  %397 = vmatpush1.msra.mxu0 0.0
  %398 = vmatprep.subr.mxu0 0.0
  %399 = vmatpush1.msra.mxu0 0.0
  %400 = vmatprep.subr.mxu0 0.0
  %401 = vmatpush1.msra.mxu0 0.0
  %402 = vmatprep.subr.mxu0 0.0
  %403 = vmatpush1.msra.mxu0 0.0
  %404 = vmatprep.subr.mxu0 0.0
  %405 = vmatpush1.msra.mxu0 0.0
  %406 = vmatprep.subr.mxu0 0.0
  %407 = vmatpush1.msra.mxu0 0.0
  %408 = vmatprep.subr.mxu0 0.0
  %409 = vmatpush1.msra.mxu0 0.0
  %410 = vmatprep.subr.mxu0 0.0
  %411 = vmatpush1.msra.mxu0 0.0
  %412 = vmatprep.subr.mxu0 0.0
  %413 = vmatpush1.msra.mxu0 0.0
  %414 = vmatprep.subr.mxu0 0.0
  %415 = vmatpush1.msra.mxu0 0.0
  %416 = vmatprep.subr.mxu0 0.0
  %417 = vmatpush1.msra.mxu0 0.0
  %418 = vmatprep.subr.mxu0 0.0
  %419 = vmatpush1.msra.mxu0 0.0
  %420 = vmatprep.subr.mxu0 0.0
  %421 = vmatpush1.msra.mxu0 0.0
  %422 = vmatprep.subr.mxu0 0.0
  %423 = vmatpush1.msra.mxu0 0.0
  %424 = vmatprep.subr.mxu0 0.0
  %425 = vmatpush1.msra.mxu0 0.0
  %426 = vmatprep.subr.mxu0 0.0
  %427 = vmatpush1.msra.mxu0 0.0
  %428 = vmatprep.subr.mxu0 0.0
  %429 = vmatpush1.msra.mxu0 0.0
  %430 = vmatprep.subr.mxu0 0.0
  %431 = vmatpush1.msra.mxu0 0.0
  %432 = vmatprep.subr.mxu0 0.0
  %433 = vmatpush1.msra.mxu0 0.0
  %434 = vmatprep.subr.mxu0 0.0
  %435 = vmatpush1.msra.mxu0 0.0
  %436 = vmatprep.subr.mxu0 0.0
  %437 = vmatpush1.msra.mxu0 0.0
  %438 = vmatprep.subr.mxu0 0.0
  %439 = vmatpush1.msra.mxu0 0.0
  %440 = vmatprep.subr.mxu0 0.0
  %441 = vmatpush1.msra.mxu0 0.0
  %442 = vmatprep.subr.mxu0 0.0
  %443 = vmatpush1.msra.mxu0 0.0
  %444 = vmatprep.mubr.f32.mxu0 0.0
  %445 = vmatmul.mubr.f32.gmra.mrb[0].mxu0 %v375
  %v446 = vpop.f32.mrb[0].mxu0
  %v447 = vadd.f32 %v366, %v446
  %v448 = vpop.f32.mrb[0].mxu0
  %449 = vmatprep.mubr.f32.mxu0 0.0
  %450 = vmatmul.mubr.f32.gmra.mrb[0].mxu0 %v378
  %v451 = vpop.f32.mrb[0].mxu0
  %v452 = vadd.f32 %v371, %v451
  %v453 = vpop.f32.mrb[0].mxu0
  %454 = vdwg.mxu0
  %v455 = vmax.f32 %v447, 0.0
  %v456 = vmax.f32 %v452, 0.0
  %v457 = vld [vmem:[%s7] sm:$0xff]
  %v458 = vld [vmem:[%s7 + $0x8] sm:$0xff]
  %460 = vset.pattern.permute.xlu0 0
  %461 = vperm.xlu0 %460, %v457
  %v462 = vpop.permute.xlu0 %461
  %465 = vset.pattern.permute.xlu0 0
  %466 = vperm.xlu0 %465, %v458
  %v467 = vpop.permute.xlu0 %466
  %v469 = vmul.f32 %v455, %v462
  %v470 = vmul.f32 %v456, %v467
  %v471 = vadd.f32 %v469, %v470
  %v472 = vrot.slane %v471, 4
  %v473 = vadd.f32 %v471, %v472
  %v474 = vrot.slane %v473, 2
  %v475 = vadd.f32 %v473, %v474
  %v476 = vrot.slane %v475, 1
  %v477 = vadd.f32 %v475, %v476
  %v478 = vld [vmem:[#allocation2] sm:$0x1]
  %480 = vset.pattern.permute.xlu0 0
  %481 = vperm.xlu0 %480, %v478
  %v482 = vpop.permute.xlu0 %481
  %v484 = vlaneseq
  %v485 = vshrl.u32 %v484, 7
  %v486 = vsub.s32 0, %v485
  %v487 = vrot.slane %v482, %v486
  %v488 = vadd.f32 %v477, %v487
  %489 = vst [vmem:[%s9] sm:$0x1] %v488
  // Predicated region
  $region38: #{nn_s_dro_forward.1} parent=0 // pred_check
    _
  $region39: #{nn_s_dro_forward.1} parent=0 // pred_check_branch
    %491 = sbr.rel (0) target = $region41
  $region40: #{nn_s_dro_forward.1} parent=0 // pred_region
    _
  $region41: #{nn_s_dro_forward.1} parent=0 // pred_fallthru
    _
  // Predicated region
  $region42: #{nn_s_dro_forward.1} parent=0 // pred_check
    _
  $region43: #{nn_s_dro_forward.1} parent=0 // pred_check_branch
    %493 = sbr.rel (0) target = $region45
  $region44: #{nn_s_dro_forward.1} parent=0 // pred_region
    _
  $region45: #{nn_s_dro_forward.1} parent=0 // pred_fallthru
    _

</llo_original>
